<compile_context>
chip_gen: v7x
topology: tpu7x:2x2x1
jax: 0.10.0
libtpu: 0.0.40
codegen_flags: <defaults>
</compile_context>

<pallas_src>
import functools

import jax
import jax.numpy as jnp
import numpy as np
from jax.experimental import pallas as pl
from jax.experimental.pallas import tpu as pltpu

# Module-consistent hyperparameters.
HIDDEN_DIM = 32                       # hidden_dim
WAVELET_DIM = 48                      # wavelet_hidden_dim
LEVELS = 2                            # decomposition levels
WHALF = WAVELET_DIM // 2              # 24
WC = WAVELET_DIM // (LEVELS + 1)      # 16 per-level frequency feature dim
CONCAT = WC * (LEVELS + 1)            # 48
H1DIM = WHALF * (LEVELS + 1)          # 72 (all levels' first-Linear outputs, concatenated)
EPS = 1e-5                            # LayerNorm eps (PyTorch default)


def _cdiv(a, b):
    return -(-a // b)


def _make_kernel(S):
    """Build the kernel for a given (static) sequence length S."""
    half_start = S // 2   # torch `[:, -S//2:, :]` == timesteps S//2 .. S-1 (last ceil(S/2))

    def kernel(x_ref, wa_ref, aux_ref, w2_ref, b48_ref, wsq_ref, o_ref):
        """One batch block (tb elements) per grid step; everything fused in VMEM.

        x_ref   : (S, tb, H)   time-major batch block of the input sequence
        wa_ref  : (H, 72)      temporal_projection folded into the 3 level-1 Linears
        aux_ref : (3, 72)      [folded first-stage bias, pool scale (first half-window sum),
                                pool scale (second half-window sum)]
        w2_ref  : (72, 48)     block-diagonal level-2 Linears, frequency_weights folded in
        b48_ref : (4, 48)      [b2cat, b_fused_attn, b_out1 (beta folded), b_out2]
        wsq_ref : (3, 48, 48)  [W_fused_attn, W_out1 (gamma folded), W_out2]
        o_ref   : (tb, 48)
        """
        wa = wa_ref[...]
        ba = aux_ref[0:1, :]
        b48 = b48_ref[...]
        tb = o_ref.shape[0]

        # Temporal stage: one (tb, H) @ (H, 72) matmul per timestep; the per-batch temporal
        # means are accumulated on the fly (pooling commuted past the linear second stage),
        # so no (tb*S, 72) / (tb*S, 48) intermediate is ever materialized.
        acc_a = jnp.zeros((tb, H1DIM), jnp.float32)   # sum over timesteps [0, S//2)
        acc_b = jnp.zeros((tb, H1DIM), jnp.float32)   # sum over timesteps [S//2, S)
        for s in range(S):                            # static unroll; S is small
            h1 = jnp.maximum(
                jnp.dot(x_ref[s], wa, preferred_element_type=jnp.float32) + ba, 0.0)
            if s < half_start:
                acc_a = acc_a + h1
            else:
                acc_b = acc_b + h1

        # Half-window / full-window means selected per 24-column level group via the
        # precomputed scale rows (level 0 -> last-half mean, levels 1..L -> full mean).
        # Exact: the mean and the second Linear are both linear (fw / bias already folded).
        pooled = acc_a * aux_ref[1:2, :] + acc_b * aux_ref[2:3, :]            # (tb, 72)

        # Block-diagonal second Linears of all levels (frequency_weights folded in).
        concat = jnp.dot(pooled, w2_ref[...],
                         preferred_element_type=jnp.float32) + b48[0:1, :]    # (tb, 48)

        # fusion_projection -> length-1 MHA (softmax == 1 exactly) -> out_proj, one matmul.
        attended = jnp.dot(concat, wsq_ref[0],
                           preferred_element_type=jnp.float32) + b48[1:2, :]

        # fusion_norm (affine folded into the next Linear).
        mu = jnp.mean(attended, axis=-1, keepdims=True)
        var = jnp.mean((attended - mu) ** 2, axis=-1, keepdims=True)
        nrm = (attended - mu) * jax.lax.rsqrt(var + EPS)

        # output_projection: Linear -> ReLU -> (Dropout = id) -> Linear.
        h = jnp.maximum(
            jnp.dot(nrm, wsq_ref[1], preferred_element_type=jnp.float32) + b48[2:3, :], 0.0)
        o_ref[...] = jnp.dot(h, wsq_ref[2],
                             preferred_element_type=jnp.float32) + b48[3:4, :]

    return kernel


def _choose_tiling(B, S, target_rows):
    """Pick tb (batch rows per grid step) so tb*S ~= target_rows, sublane-aligned."""
    tb = max(1, target_rows // max(S, 1))
    tb = min(tb, B)
    tb = _cdiv(tb, 8) * 8                   # sublane-aligned output / x blocks
    n = _cdiv(B, tb)
    if n > 1 and n % 2 == 1:                # even step count keeps both v7x TCs busy
        n += 1
        tb = _cdiv(_cdiv(B, n), 8) * 8
        n = _cdiv(B, tb)
    return tb, n, tb * n


def prepare_operands(params):
    """Fold/pack the 19 PyTorch-style parameters into 5 kernel operands.

    Expensive (host/XLA matmuls) — call ONCE per parameter set and reuse across calls.
    """
    (wtp, btp, fw, w1s, b1s, w2s, b2s, wf, bf,
     wv, bv, wo, bo, gamma, beta, wp1, bp1, wp2, bp2) = params

    # (1) temporal_projection folded into the concatenated level-1 Linears.
    w1cat = jnp.concatenate([w1s[l] for l in range(LEVELS + 1)], axis=1)   # (48, 72)
    b1cat = jnp.concatenate([b1s[l] for l in range(LEVELS + 1)], axis=1)   # (1, 72)
    wa = wtp @ w1cat                                                       # (H, 72)
    ba = btp @ w1cat + b1cat                                               # (1, 72)

    # (2) level-2 Linears -> one block-diagonal weight, frequency_weights folded in.
    w2blk = jnp.zeros((H1DIM, CONCAT), jnp.float32)
    b2cat = []
    for l in range(LEVELS + 1):
        w2blk = w2blk.at[l * WHALF:(l + 1) * WHALF, l * WC:(l + 1) * WC].set(w2s[l] * fw[0, l])
        b2cat.append(b2s[l] * fw[0, l])
    b2cat = jnp.concatenate(b2cat, axis=1)                                 # (1, 48)

    # (3) fusion_projection -> MHA v_proj -> out_proj (length-1 seq => softmax == 1).
    wfu = wf @ wv @ wo                                                     # (48, 48)
    bfu = (bf @ wv + bv) @ wo + bo                                         # (1, 48)

    # (4) LayerNorm affine folded into output_projection[0].
    wp1g = gamma.reshape(-1, 1) * wp1
    bp1b = beta @ wp1 + bp1

    wsq = jnp.stack([wfu, wp1g, wp2])                                      # (3, 48, 48)
    b48 = jnp.concatenate([b2cat, bfu, bp1b, bp2], axis=0)                 # (4, 48)

    return dict(wa=wa, ba=ba, w2=w2blk, b48=b48, wsq=wsq)


def wavelet_processor(x, ops, *, target_rows=1024, input_dtype=None):
    """x: (B, S, HIDDEN_DIM) float32 -> (B, WAVELET_DIM) float32.

    ops         : output of prepare_operands(params) (folded weights; compute once, reuse).
    target_rows : approx rows of x per grid step (tb*S); controls pipelining granularity.
    input_dtype : e.g. jnp.bfloat16 to halve x HBM traffic (v5e lever; accumulation stays
                  f32). Default None keeps float32 end-to-end (reference-exact tolerance).
    """
    B, S, H = x.shape
    assert H == HIDDEN_DIM
    tb, n_steps, Bp = _choose_tiling(B, S, target_rows)
    if Bp != B:
        x = jnp.pad(x, ((0, Bp - B), (0, 0), (0, 0)))
    xt = jnp.transpose(x, (1, 0, 2))          # (S, Bp, H): time-major -> per-step 2-D matmuls

    wa = ops["wa"]
    if input_dtype is not None:
        xt = xt.astype(input_dtype)
        wa = wa.astype(input_dtype)

    # aux rows: [folded first-stage bias; pooling scales for first / second half-window sums]
    # (column c < 24 -> level 0: only the last ceil(S/2) steps contribute, scaled by 1/len;
    #  column c >= 24 -> levels 1..L: full-window mean, both sums scaled by 1/S).
    half_len = S - S // 2
    col = np.arange(H1DIM)
    sa = np.where(col < WHALF, 0.0, 1.0 / S).astype(np.float32)[None, :]
    sb = np.where(col < WHALF, 1.0 / half_len, 1.0 / S).astype(np.float32)[None, :]
    aux = jnp.concatenate([ops["ba"], jnp.asarray(sa), jnp.asarray(sb)], axis=0)   # (3, 72)

    # Explicit per-step VMEM budget (sized with v7x's 64 MiB physical VMEM in mind):
    # double-buffered x block + double-buffered output block + params + intermediates.
    xbytes = 2 if input_dtype == jnp.bfloat16 else 4
    est = (2 * S * tb * H * xbytes
           + 2 * tb * WAVELET_DIM * 4
           + 2 * 4 * (H * H1DIM + 3 * H1DIM + H1DIM * CONCAT + 4 * WAVELET_DIM
                      + 3 * WAVELET_DIM * WAVELET_DIM)
           + 6 * tb * H1DIM * 4)
    vmem_limit = int(min(max(2 * est + (4 << 20), 16 << 20), 64 << 20))

    out = pl.pallas_call(
        _make_kernel(S),
        out_shape=jax.ShapeDtypeStruct((Bp, WAVELET_DIM), jnp.float32),
        grid=(n_steps,),
        in_specs=[
            pl.BlockSpec((S, tb, H), lambda i: (0, i, 0)),       # x (time-major block)
            pl.BlockSpec(wa.shape, lambda i: (0, 0)),            # folded first-stage weight
            pl.BlockSpec(aux.shape, lambda i: (0, 0)),            # bias + pooling scales
            pl.BlockSpec(ops["w2"].shape, lambda i: (0, 0)),      # block-diag second stage
            pl.BlockSpec(ops["b48"].shape, lambda i: (0, 0)),     # packed biases
            pl.BlockSpec(ops["wsq"].shape, lambda i: (0, 0, 0)),  # fusion-head weights
        ],
        out_specs=pl.BlockSpec((tb, WAVELET_DIM), lambda i: (i, 0)),
        compiler_params=pltpu.CompilerParams(
            dimension_semantics=("parallel",),
            vmem_limit_bytes=vmem_limit),
    )(xt, wa, aux, ops["w2"], ops["b48"], ops["wsq"])
    return out[:B]


def init_params(key):
    """Deterministic PyTorch-Linear-style init (uniform +/- 1/sqrt(fan_in))."""
    ks = jax.random.split(key, 16)

    def lin(k, fan_in, fan_out):
        k1, k2 = jax.random.split(k)
        bound = 1.0 / np.sqrt(fan_in)
        w = jax.random.uniform(k1, (fan_in, fan_out), jnp.float32, -bound, bound)
        b = jax.random.uniform(k2, (1, fan_out), jnp.float32, -bound, bound)
        return w, b

    wtp, btp = lin(ks[0], HIDDEN_DIM, WAVELET_DIM)
    fw = jnp.ones((1, LEVELS + 1), jnp.float32)                 # frequency_weights (init=ones)

    w1l, b1l, w2l, b2l = [], [], [], []
    for i in range(LEVELS + 1):
        w1, b1 = lin(ks[1 + i], WAVELET_DIM, WHALF)
        w2, b2 = lin(ks[4 + i], WHALF, WC)
        w1l.append(w1); b1l.append(b1); w2l.append(w2); b2l.append(b2)
    w1s = jnp.stack(w1l)                                        # (L+1, W, W/2)
    b1s = jnp.stack(b1l)                                        # (L+1, 1, W/2)
    w2s = jnp.stack(w2l)                                        # (L+1, W/2, WC)
    b2s = jnp.stack(b2l)                                        # (L+1, 1, WC)

    wf, bf = lin(ks[7], CONCAT, WAVELET_DIM)                    # fusion_projection
    wv, bv = lin(ks[8], WAVELET_DIM, WAVELET_DIM)               # MHA value projection
    wo, bo = lin(ks[9], WAVELET_DIM, WAVELET_DIM)               # MHA out_proj
    gamma = jnp.ones((1, WAVELET_DIM), jnp.float32)             # LayerNorm weight
    beta = jnp.zeros((1, WAVELET_DIM), jnp.float32)             # LayerNorm bias
    wp1, bp1 = lin(ks[10], WAVELET_DIM, WAVELET_DIM)            # output_projection[0]
    wp2, bp2 = lin(ks[11], WAVELET_DIM, WAVELET_DIM)            # output_projection[3]

    return (wtp, btp, fw, w1s, b1s, w2s, b2s, wf, bf,
            wv, bv, wo, bo, gamma, beta, wp1, bp1, wp2, bp2)


def reference(x, params):
    """Plain-JAX reference of the PyTorch forward (eval mode), unfused weights."""
    (wtp, btp, fw, w1s, b1s, w2s, b2s, wf, bf,
     wv, bv, wo, bo, gamma, beta, wp1, bp1, wp2, bp2) = params
    B, S, H = x.shape
    xp = x @ wtp + btp
    pooled = []
    for level in range(LEVELS + 1):
        h1 = jax.nn.relu(xp @ w1s[level] + b1s[level])
        freq = h1 @ w2s[level] + b2s[level]
        weighted = freq * fw[0, level]
        if level == 0:
            p = weighted[:, S // 2:, :].mean(axis=1)     # last ceil(S/2) steps (torch [-S//2:])
        else:
            p = weighted.mean(axis=1)
        pooled.append(p)
    concat = jnp.concatenate(pooled, axis=-1)
    proj = concat @ wf + bf
    v = proj @ wv + bv
    attended = v @ wo + bo                  # MHA over a length-1 sequence: softmax == 1
    mu = attended.mean(-1, keepdims=True)
    var = ((attended - mu) ** 2).mean(-1, keepdims=True)
    normed = (attended - mu) / jnp.sqrt(var + EPS) * gamma + beta
    h = jax.nn.relu(normed @ wp1 + bp1)
    return h @ wp2 + bp2


if __name__ == "__main__":
    key = jax.random.PRNGKey(0)
    kx, kp = jax.random.split(key)
    params = init_params(kp)
    ops = prepare_operands(params)          # hoisted weight folding: compute once, reuse

    B, S = 2, 8
    x = jax.random.normal(kx, (B, S, HIDDEN_DIM), dtype=jnp.float32)

    fwd = jax.jit(wavelet_processor)
    out = jax.block_until_ready(fwd(x, ops))
    assert out.shape == (B, WAVELET_DIM)
    np.testing.assert_allclose(np.asarray(out), np.asarray(reference(x, params)),
                               rtol=1e-4, atol=1e-5)

    # Exercise the multi-step (batch-tiled, padded) grid path as well.
    B2 = 20
    x2 = jax.random.normal(jax.random.PRNGKey(1), (B2, S, HIDDEN_DIM), dtype=jnp.float32)
    fwd_tiled = jax.jit(functools.partial(wavelet_processor, target_rows=64))
    out2 = jax.block_until_ready(fwd_tiled(x2, ops))
    np.testing.assert_allclose(np.asarray(out2), np.asarray(reference(x2, params)),
                               rtol=1e-4, atol=1e-5)

    print("KERNEL_OK")
</pallas_src>

<mosaic_0001>
module attributes {stable_mosaic.version = 11 : i64} {
  func.func @kernel(%arg0: i32, %arg1: memref<8x8x32xf32, #tpu.memory_space<vmem>>, %arg2: memref<32x72xf32, #tpu.memory_space<vmem>>, %arg3: memref<3x72xf32, #tpu.memory_space<vmem>>, %arg4: memref<72x48xf32, #tpu.memory_space<vmem>>, %arg5: memref<4x48xf32, #tpu.memory_space<vmem>>, %arg6: memref<3x48x48xf32, #tpu.memory_space<vmem>>, %arg7: memref<8x48xf32, #tpu.memory_space<vmem>>) attributes {dimension_semantics = [#tpu.dimension_semantics<parallel>], iteration_bounds = array<i64: 1>, scalar_prefetch = 0 : i64, scratch_operands = 0 : i64, tpu.core_type = #tpu.core_type<tc>, window_params = [{transform_indices = @transform_0, window_bounds = array<i64: 8, 8, 32>}, {pipeline_mode = #tpu.pipeline_mode<synchronous>, transform_indices = @transform_1, window_bounds = array<i64: 32, 72>}, {pipeline_mode = #tpu.pipeline_mode<synchronous>, transform_indices = @transform_2, window_bounds = array<i64: 3, 72>}, {pipeline_mode = #tpu.pipeline_mode<synchronous>, transform_indices = @transform_3, window_bounds = array<i64: 72, 48>}, {pipeline_mode = #tpu.pipeline_mode<synchronous>, transform_indices = @transform_4, window_bounds = array<i64: 4, 48>}, {pipeline_mode = #tpu.pipeline_mode<synchronous>, transform_indices = @transform_5, window_bounds = array<i64: 3, 48, 48>}, {transform_indices = @transform_6, window_bounds = array<i64: 8, 48>}]} {
    %c0 = arith.constant 0 : index
    %c0_0 = arith.constant 0 : index
    %0 = vector.load %arg2[%c0, %c0_0] : memref<32x72xf32, #tpu.memory_space<vmem>>, vector<32x72xf32>
    %c0_1 = arith.constant 0 : index
    %c0_2 = arith.constant 0 : index
    %1 = vector.load %arg3[%c0_1, %c0_2] : memref<3x72xf32, #tpu.memory_space<vmem>>, vector<1x72xf32>
    %c0_3 = arith.constant 0 : index
    %c0_4 = arith.constant 0 : index
    %2 = vector.load %arg5[%c0_3, %c0_4] : memref<4x48xf32, #tpu.memory_space<vmem>>, vector<4x48xf32>
    %cst = arith.constant 0.000000e+00 : f32
    %3 = vector.broadcast %cst : f32 to vector<8x72xf32>
    %cst_5 = arith.constant 0.000000e+00 : f32
    %4 = vector.broadcast %cst_5 : f32 to vector<8x72xf32>
    %c0_6 = arith.constant 0 : index
    %c0_7 = arith.constant 0 : index
    %c0_8 = arith.constant 0 : index
    %5 = vector.load %arg1[%c0_6, %c0_7, %c0_8] : memref<8x8x32xf32, #tpu.memory_space<vmem>>, vector<1x8x32xf32>
    %6 = vector.shape_cast %5 : vector<1x8x32xf32> to vector<8x32xf32>
    %cst_9 = arith.constant dense<0.000000e+00> : vector<8x72xf32>
    %7 = tpu.matmul %6, %0, %cst_9 {dimension_numbers = #tpu.dot_dimension_numbers<[1], [0], [0], [1], [0, 0, 1, 1], [], []>} : vector<8x32xf32>, vector<32x72xf32>, vector<8x72xf32> -> vector<8x72xf32>
    %8 = vector.broadcast %1 : vector<1x72xf32> to vector<8x72xf32>
    %9 = arith.addf %7, %8 : vector<8x72xf32>
    %cst_10 = arith.constant 0.000000e+00 : f32
    %10 = vector.broadcast %cst_10 : f32 to vector<8x72xf32>
    %11 = arith.maximumf %9, %10 : vector<8x72xf32>
    %12 = arith.addf %3, %11 : vector<8x72xf32>
    %c1 = arith.constant 1 : index
    %c0_11 = arith.constant 0 : index
    %c0_12 = arith.constant 0 : index
    %13 = vector.load %arg1[%c1, %c0_11, %c0_12] : memref<8x8x32xf32, #tpu.memory_space<vmem>>, vector<1x8x32xf32>
    %14 = vector.shape_cast %13 : vector<1x8x32xf32> to vector<8x32xf32>
    %cst_13 = arith.constant dense<0.000000e+00> : vector<8x72xf32>
    %15 = tpu.matmul %14, %0, %cst_13 {dimension_numbers = #tpu.dot_dimension_numbers<[1], [0], [0], [1], [0, 0, 1, 1], [], []>} : vector<8x32xf32>, vector<32x72xf32>, vector<8x72xf32> -> vector<8x72xf32>
    %16 = vector.broadcast %1 : vector<1x72xf32> to vector<8x72xf32>
    %17 = arith.addf %15, %16 : vector<8x72xf32>
    %cst_14 = arith.constant 0.000000e+00 : f32
    %18 = vector.broadcast %cst_14 : f32 to vector<8x72xf32>
    %19 = arith.maximumf %17, %18 : vector<8x72xf32>
    %20 = arith.addf %12, %19 : vector<8x72xf32>
    %c2 = arith.constant 2 : index
    %c0_15 = arith.constant 0 : index
    %c0_16 = arith.constant 0 : index
    %21 = vector.load %arg1[%c2, %c0_15, %c0_16] : memref<8x8x32xf32, #tpu.memory_space<vmem>>, vector<1x8x32xf32>
    %22 = vector.shape_cast %21 : vector<1x8x32xf32> to vector<8x32xf32>
    %cst_17 = arith.constant dense<0.000000e+00> : vector<8x72xf32>
    %23 = tpu.matmul %22, %0, %cst_17 {dimension_numbers = #tpu.dot_dimension_numbers<[1], [0], [0], [1], [0, 0, 1, 1], [], []>} : vector<8x32xf32>, vector<32x72xf32>, vector<8x72xf32> -> vector<8x72xf32>
    %24 = vector.broadcast %1 : vector<1x72xf32> to vector<8x72xf32>
    %25 = arith.addf %23, %24 : vector<8x72xf32>
    %cst_18 = arith.constant 0.000000e+00 : f32
    %26 = vector.broadcast %cst_18 : f32 to vector<8x72xf32>
    %27 = arith.maximumf %25, %26 : vector<8x72xf32>
    %28 = arith.addf %20, %27 : vector<8x72xf32>
    %c3 = arith.constant 3 : index
    %c0_19 = arith.constant 0 : index
    %c0_20 = arith.constant 0 : index
    %29 = vector.load %arg1[%c3, %c0_19, %c0_20] : memref<8x8x32xf32, #tpu.memory_space<vmem>>, vector<1x8x32xf32>
    %30 = vector.shape_cast %29 : vector<1x8x32xf32> to vector<8x32xf32>
    %cst_21 = arith.constant dense<0.000000e+00> : vector<8x72xf32>
    %31 = tpu.matmul %30, %0, %cst_21 {dimension_numbers = #tpu.dot_dimension_numbers<[1], [0], [0], [1], [0, 0, 1, 1], [], []>} : vector<8x32xf32>, vector<32x72xf32>, vector<8x72xf32> -> vector<8x72xf32>
    %32 = vector.broadcast %1 : vector<1x72xf32> to vector<8x72xf32>
    %33 = arith.addf %31, %32 : vector<8x72xf32>
    %cst_22 = arith.constant 0.000000e+00 : f32
    %34 = vector.broadcast %cst_22 : f32 to vector<8x72xf32>
    %35 = arith.maximumf %33, %34 : vector<8x72xf32>
    %36 = arith.addf %28, %35 : vector<8x72xf32>
    %c4 = arith.constant 4 : index
    %c0_23 = arith.constant 0 : index
    %c0_24 = arith.constant 0 : index
    %37 = vector.load %arg1[%c4, %c0_23, %c0_24] : memref<8x8x32xf32, #tpu.memory_space<vmem>>, vector<1x8x32xf32>
    %38 = vector.shape_cast %37 : vector<1x8x32xf32> to vector<8x32xf32>
    %cst_25 = arith.constant dense<0.000000e+00> : vector<8x72xf32>
    %39 = tpu.matmul %38, %0, %cst_25 {dimension_numbers = #tpu.dot_dimension_numbers<[1], [0], [0], [1], [0, 0, 1, 1], [], []>} : vector<8x32xf32>, vector<32x72xf32>, vector<8x72xf32> -> vector<8x72xf32>
    %40 = vector.broadcast %1 : vector<1x72xf32> to vector<8x72xf32>
    %41 = arith.addf %39, %40 : vector<8x72xf32>
    %cst_26 = arith.constant 0.000000e+00 : f32
    %42 = vector.broadcast %cst_26 : f32 to vector<8x72xf32>
    %43 = arith.maximumf %41, %42 : vector<8x72xf32>
    %44 = arith.addf %4, %43 : vector<8x72xf32>
    %c5 = arith.constant 5 : index
    %c0_27 = arith.constant 0 : index
    %c0_28 = arith.constant 0 : index
    %45 = vector.load %arg1[%c5, %c0_27, %c0_28] : memref<8x8x32xf32, #tpu.memory_space<vmem>>, vector<1x8x32xf32>
    %46 = vector.shape_cast %45 : vector<1x8x32xf32> to vector<8x32xf32>
    %cst_29 = arith.constant dense<0.000000e+00> : vector<8x72xf32>
    %47 = tpu.matmul %46, %0, %cst_29 {dimension_numbers = #tpu.dot_dimension_numbers<[1], [0], [0], [1], [0, 0, 1, 1], [], []>} : vector<8x32xf32>, vector<32x72xf32>, vector<8x72xf32> -> vector<8x72xf32>
    %48 = vector.broadcast %1 : vector<1x72xf32> to vector<8x72xf32>
    %49 = arith.addf %47, %48 : vector<8x72xf32>
    %cst_30 = arith.constant 0.000000e+00 : f32
    %50 = vector.broadcast %cst_30 : f32 to vector<8x72xf32>
    %51 = arith.maximumf %49, %50 : vector<8x72xf32>
    %52 = arith.addf %44, %51 : vector<8x72xf32>
    %c6 = arith.constant 6 : index
    %c0_31 = arith.constant 0 : index
    %c0_32 = arith.constant 0 : index
    %53 = vector.load %arg1[%c6, %c0_31, %c0_32] : memref<8x8x32xf32, #tpu.memory_space<vmem>>, vector<1x8x32xf32>
    %54 = vector.shape_cast %53 : vector<1x8x32xf32> to vector<8x32xf32>
    %cst_33 = arith.constant dense<0.000000e+00> : vector<8x72xf32>
    %55 = tpu.matmul %54, %0, %cst_33 {dimension_numbers = #tpu.dot_dimension_numbers<[1], [0], [0], [1], [0, 0, 1, 1], [], []>} : vector<8x32xf32>, vector<32x72xf32>, vector<8x72xf32> -> vector<8x72xf32>
    %56 = vector.broadcast %1 : vector<1x72xf32> to vector<8x72xf32>
    %57 = arith.addf %55, %56 : vector<8x72xf32>
    %cst_34 = arith.constant 0.000000e+00 : f32
    %58 = vector.broadcast %cst_34 : f32 to vector<8x72xf32>
    %59 = arith.maximumf %57, %58 : vector<8x72xf32>
    %60 = arith.addf %52, %59 : vector<8x72xf32>
    %c7 = arith.constant 7 : index
    %c0_35 = arith.constant 0 : index
    %c0_36 = arith.constant 0 : index
    %61 = vector.load %arg1[%c7, %c0_35, %c0_36] : memref<8x8x32xf32, #tpu.memory_space<vmem>>, vector<1x8x32xf32>
    %62 = vector.shape_cast %61 : vector<1x8x32xf32> to vector<8x32xf32>
    %cst_37 = arith.constant dense<0.000000e+00> : vector<8x72xf32>
    %63 = tpu.matmul %62, %0, %cst_37 {dimension_numbers = #tpu.dot_dimension_numbers<[1], [0], [0], [1], [0, 0, 1, 1], [], []>} : vector<8x32xf32>, vector<32x72xf32>, vector<8x72xf32> -> vector<8x72xf32>
    %64 = vector.broadcast %1 : vector<1x72xf32> to vector<8x72xf32>
    %65 = arith.addf %63, %64 : vector<8x72xf32>
    %cst_38 = arith.constant 0.000000e+00 : f32
    %66 = vector.broadcast %cst_38 : f32 to vector<8x72xf32>
    %67 = arith.maximumf %65, %66 : vector<8x72xf32>
    %68 = arith.addf %60, %67 : vector<8x72xf32>
    %c1_39 = arith.constant 1 : index
    %c0_40 = arith.constant 0 : index
    %69 = vector.load %arg3[%c1_39, %c0_40] : memref<3x72xf32, #tpu.memory_space<vmem>>, vector<1x72xf32>
    %70 = vector.broadcast %69 : vector<1x72xf32> to vector<8x72xf32>
    %71 = arith.mulf %36, %70 : vector<8x72xf32>
    %c2_41 = arith.constant 2 : index
    %c0_42 = arith.constant 0 : index
    %72 = vector.load %arg3[%c2_41, %c0_42] : memref<3x72xf32, #tpu.memory_space<vmem>>, vector<1x72xf32>
    %73 = vector.broadcast %72 : vector<1x72xf32> to vector<8x72xf32>
    %74 = arith.mulf %68, %73 : vector<8x72xf32>
    %75 = arith.addf %71, %74 : vector<8x72xf32>
    %c0_43 = arith.constant 0 : index
    %c0_44 = arith.constant 0 : index
    %76 = vector.load %arg4[%c0_43, %c0_44] : memref<72x48xf32, #tpu.memory_space<vmem>>, vector<72x48xf32>
    %cst_45 = arith.constant dense<0.000000e+00> : vector<8x48xf32>
    %77 = tpu.matmul %75, %76, %cst_45 {dimension_numbers = #tpu.dot_dimension_numbers<[1], [0], [0], [1], [0, 0, 1, 1], [], []>} : vector<8x72xf32>, vector<72x48xf32>, vector<8x48xf32> -> vector<8x48xf32>
    %78 = vector.extract_strided_slice %2 {offsets = [0, 0], sizes = [1, 48], strides = [1, 1]} : vector<4x48xf32> to vector<1x48xf32>
    %79 = vector.broadcast %78 : vector<1x48xf32> to vector<8x48xf32>
    %80 = arith.addf %77, %79 : vector<8x48xf32>
    %c0_46 = arith.constant 0 : index
    %c0_47 = arith.constant 0 : index
    %c0_48 = arith.constant 0 : index
    %81 = vector.load %arg6[%c0_46, %c0_47, %c0_48] : memref<3x48x48xf32, #tpu.memory_space<vmem>>, vector<1x48x48xf32>
    %82 = vector.shape_cast %81 : vector<1x48x48xf32> to vector<48x48xf32>
    %cst_49 = arith.constant dense<0.000000e+00> : vector<8x48xf32>
    %83 = tpu.matmul %80, %82, %cst_49 {dimension_numbers = #tpu.dot_dimension_numbers<[1], [0], [0], [1], [0, 0, 1, 1], [], []>} : vector<8x48xf32>, vector<48x48xf32>, vector<8x48xf32> -> vector<8x48xf32>
    %84 = vector.extract_strided_slice %2 {offsets = [1, 0], sizes = [1, 48], strides = [1, 1]} : vector<4x48xf32> to vector<1x48xf32>
    %85 = vector.broadcast %84 : vector<1x48xf32> to vector<8x48xf32>
    %86 = arith.addf %83, %85 : vector<8x48xf32>
    %cst_50 = arith.constant dense<0.000000e+00> : vector<8xf32>
    %87 = vector.multi_reduction <add>, %86, %cst_50 [1] : vector<8x48xf32> to vector<8xf32>
    %88 = vector.shape_cast %87 : vector<8xf32> to vector<8x1xf32>
    %cst_51 = arith.constant 4.800000e+01 : f32
    %89 = vector.broadcast %cst_51 : f32 to vector<8x1xf32>
    %90 = arith.divf %88, %89 : vector<8x1xf32>
    %91 = vector.broadcast %90 : vector<8x1xf32> to vector<8x48xf32>
    %92 = arith.subf %86, %91 : vector<8x48xf32>
    %93 = arith.mulf %92, %92 : vector<8x48xf32>
    %cst_52 = arith.constant dense<0.000000e+00> : vector<8xf32>
    %94 = vector.multi_reduction <add>, %93, %cst_52 [1] : vector<8x48xf32> to vector<8xf32>
    %95 = vector.shape_cast %94 : vector<8xf32> to vector<8x1xf32>
    %cst_53 = arith.constant 4.800000e+01 : f32
    %96 = vector.broadcast %cst_53 : f32 to vector<8x1xf32>
    %97 = arith.divf %95, %96 : vector<8x1xf32>
    %98 = vector.broadcast %90 : vector<8x1xf32> to vector<8x48xf32>
    %99 = arith.subf %86, %98 : vector<8x48xf32>
    %cst_54 = arith.constant 9.99999974E-6 : f32
    %100 = vector.broadcast %cst_54 : f32 to vector<8x1xf32>
    %101 = arith.addf %97, %100 : vector<8x1xf32>
    %102 = math.rsqrt %101 : vector<8x1xf32>
    %103 = vector.broadcast %102 : vector<8x1xf32> to vector<8x48xf32>
    %104 = arith.mulf %99, %103 : vector<8x48xf32>
    %c1_55 = arith.constant 1 : index
    %c0_56 = arith.constant 0 : index
    %c0_57 = arith.constant 0 : index
    %105 = vector.load %arg6[%c1_55, %c0_56, %c0_57] : memref<3x48x48xf32, #tpu.memory_space<vmem>>, vector<1x48x48xf32>
    %106 = vector.shape_cast %105 : vector<1x48x48xf32> to vector<48x48xf32>
    %cst_58 = arith.constant dense<0.000000e+00> : vector<8x48xf32>
    %107 = tpu.matmul %104, %106, %cst_58 {dimension_numbers = #tpu.dot_dimension_numbers<[1], [0], [0], [1], [0, 0, 1, 1], [], []>} : vector<8x48xf32>, vector<48x48xf32>, vector<8x48xf32> -> vector<8x48xf32>
    %108 = vector.extract_strided_slice %2 {offsets = [2, 0], sizes = [1, 48], strides = [1, 1]} : vector<4x48xf32> to vector<1x48xf32>
    %109 = vector.broadcast %108 : vector<1x48xf32> to vector<8x48xf32>
    %110 = arith.addf %107, %109 : vector<8x48xf32>
    %cst_59 = arith.constant 0.000000e+00 : f32
    %111 = vector.broadcast %cst_59 : f32 to vector<8x48xf32>
    %112 = arith.maximumf %110, %111 : vector<8x48xf32>
    %c2_60 = arith.constant 2 : index
    %c0_61 = arith.constant 0 : index
    %c0_62 = arith.constant 0 : index
    %113 = vector.load %arg6[%c2_60, %c0_61, %c0_62] : memref<3x48x48xf32, #tpu.memory_space<vmem>>, vector<1x48x48xf32>
    %114 = vector.shape_cast %113 : vector<1x48x48xf32> to vector<48x48xf32>
    %cst_63 = arith.constant dense<0.000000e+00> : vector<8x48xf32>
    %115 = tpu.matmul %112, %114, %cst_63 {dimension_numbers = #tpu.dot_dimension_numbers<[1], [0], [0], [1], [0, 0, 1, 1], [], []>} : vector<8x48xf32>, vector<48x48xf32>, vector<8x48xf32> -> vector<8x48xf32>
    %116 = vector.extract_strided_slice %2 {offsets = [3, 0], sizes = [1, 48], strides = [1, 1]} : vector<4x48xf32> to vector<1x48xf32>
    %117 = vector.broadcast %116 : vector<1x48xf32> to vector<8x48xf32>
    %118 = arith.addf %115, %117 : vector<8x48xf32>
    %c0_64 = arith.constant 0 : index
    %c0_65 = arith.constant 0 : index
    %119 = vector.load %arg7[%c0_64, %c0_65] : memref<8x48xf32, #tpu.memory_space<vmem>>, vector<8x48xf32>
    tpu.vector_store %arg7[%c0_64, %c0_65], %118 {strides = array<i32>} : memref<8x48xf32, #tpu.memory_space<vmem>>, vector<8x48xf32>,
    return
  }
  func.func @transform_0(%arg0: i32) -> (i32, i32, i32) {
    %c0_i32 = arith.constant 0 : i32
    %c0_i32_0 = arith.constant 0 : i32
    %c0_i32_1 = arith.constant 0 : i32
    return %c0_i32, %arg0, %c0_i32_0 : i32, i32, i32
  }
  func.func @transform_1(%arg0: i32) -> (i32, i32) {
    %c0_i32 = arith.constant 0 : i32
    %c0_i32_0 = arith.constant 0 : i32
    %c0_i32_1 = arith.constant 0 : i32
    return %c0_i32, %c0_i32_0 : i32, i32
  }
  func.func @transform_2(%arg0: i32) -> (i32, i32) {
    %c0_i32 = arith.constant 0 : i32
    %c0_i32_0 = arith.constant 0 : i32
    %c0_i32_1 = arith.constant 0 : i32
    return %c0_i32, %c0_i32_0 : i32, i32
  }
  func.func @transform_3(%arg0: i32) -> (i32, i32) {
    %c0_i32 = arith.constant 0 : i32
    %c0_i32_0 = arith.constant 0 : i32
    %c0_i32_1 = arith.constant 0 : i32
    return %c0_i32, %c0_i32_0 : i32, i32
  }
  func.func @transform_4(%arg0: i32) -> (i32, i32) {
    %c0_i32 = arith.constant 0 : i32
    %c0_i32_0 = arith.constant 0 : i32
    %c0_i32_1 = arith.constant 0 : i32
    return %c0_i32, %c0_i32_0 : i32, i32
  }
  func.func @transform_5(%arg0: i32) -> (i32, i32, i32) {
    %c0_i32 = arith.constant 0 : i32
    %c0_i32_0 = arith.constant 0 : i32
    %c0_i32_1 = arith.constant 0 : i32
    %c0_i32_2 = arith.constant 0 : i32
    return %c0_i32, %c0_i32_0, %c0_i32_1 : i32, i32, i32
  }
  func.func @transform_6(%arg0: i32) -> (i32, i32) {
    %c0_i32 = arith.constant 0 : i32
    %c0_i32_0 = arith.constant 0 : i32
    return %arg0, %c0_i32 : i32, i32
  }
}

</mosaic_0001>

<llo_original>
// kernel: wavelet_processor.1
$region0: #{wavelet_processor.1}
  #allocation0 [shape = 'u32[]', space=smem, size = 0x4, offset = 0x4, fixed_abs, tag = 'smem constant byte address 0x4 - core index']
  #allocation1 [shape = 'u32[144,128]{1,0:T(1,128)}', space=vmem, size = 0x12000, scoped, tag = 'internal scratch']
  %s0 = inlined_call_operand.vmem [shape: f32[8,8,32], index: 0, kind: input, shape index: {}]
  %s1 = inlined_call_operand.vmem [shape: f32[32,72], index: 1, kind: input, shape index: {}]
  %s2 = inlined_call_operand.vmem [shape: f32[3,72], index: 2, kind: input, shape index: {}]
  %s3 = inlined_call_operand.vmem [shape: f32[72,48], index: 3, kind: input, shape index: {}]
  %s4 = inlined_call_operand.vmem [shape: f32[4,48], index: 4, kind: input, shape index: {}]
  %s5 = inlined_call_operand.vmem [shape: f32[3,48,48], index: 5, kind: input, shape index: {}]
  %s6 = inlined_call_operand.vmem [shape: f32[8,48], index: 6, kind: output, shape index: {}]
  %s7 = sld [smem:[#allocation0]]
  $region34: #{wavelet_processor.1} parent=0
    _
  %s9 = ssub.s32 1, %s7
  %s10 = scalar_select 0, %s9, %s7
  // Predicated region
  $region2: #{wavelet_processor.1} parent=0 // pred_check
    _
  $region3: #{wavelet_processor.1} parent=0 // pred_check_branch
    %12 = sbr.rel (0) target = $region5
  $region4: #{wavelet_processor.1} parent=0 // pred_region
    _
  $region5: #{wavelet_processor.1} parent=0 // pred_fallthru
    _
  // Predicated region
  $region6: #{wavelet_processor.1} parent=0 // pred_check
    _
  $region7: #{wavelet_processor.1} parent=0 // pred_check_branch
    %14 = sbr.rel (0) target = $region9
  $region8: #{wavelet_processor.1} parent=0 // pred_region
    _
  $region9: #{wavelet_processor.1} parent=0 // pred_fallthru
    _
  // Predicated region
  $region10: #{wavelet_processor.1} parent=0 // pred_check
    _
  $region11: #{wavelet_processor.1} parent=0 // pred_check_branch
    %16 = sbr.rel (0) target = $region13
  $region12: #{wavelet_processor.1} parent=0 // pred_region
    _
  $region13: #{wavelet_processor.1} parent=0 // pred_fallthru
    _
  // Predicated region
  $region14: #{wavelet_processor.1} parent=0 // pred_check
    _
  $region15: #{wavelet_processor.1} parent=0 // pred_check_branch
    %18 = sbr.rel (0) target = $region17
  $region16: #{wavelet_processor.1} parent=0 // pred_region
    _
  $region17: #{wavelet_processor.1} parent=0 // pred_fallthru
    _
  // Predicated region
  $region18: #{wavelet_processor.1} parent=0 // pred_check
    _
  $region19: #{wavelet_processor.1} parent=0 // pred_check_branch
    %20 = sbr.rel (0) target = $region21
  $region20: #{wavelet_processor.1} parent=0 // pred_region
    _
  $region21: #{wavelet_processor.1} parent=0 // pred_fallthru
    _
  // Predicated region
  $region22: #{wavelet_processor.1} parent=0 // pred_check
    _
  $region23: #{wavelet_processor.1} parent=0 // pred_check_branch
    %22 = sbr.rel (0) target = $region25
  $region24: #{wavelet_processor.1} parent=0 // pred_region
    _
  $region25: #{wavelet_processor.1} parent=0 // pred_fallthru
    _
  %v23 = vld [vmem:[%s1] sm:$0xff]
  %v24 = vld [vmem:[%s1 + $0x8] sm:$0xff]
  %v25 = vld [vmem:[%s1 + $0x10] sm:$0xff]
  %v26 = vld [vmem:[%s1 + $0x18] sm:$0xff]
  %v27 = vld [vmem:[%s2] sm:$0x1]
  %v28 = vld [vmem:[%s4] sm:$0xf]
  %v29 = vld [vmem:[%s0] sm:$0xff]
  %v30 = vlaneseq
  %v31 = vshrl.u32 %v30, 7
  %v32 = vsub.s32 0, %v31
  %v33 = vrot.slane %v27, %v32
  %vm34 = vcmask 261120
  %v36 = vsel %vm34, %v29, 0
  %38 = vmatprep.subr.mxu0 0.0
  %39 = vmatpush1.msra.mxu0 %v23
  %40 = vmatprep.subr.mxu0 0.0
  %41 = vmatpush1.msra.mxu0 %v24
  %42 = vmatprep.subr.mxu0 0.0
  %43 = vmatpush1.msra.mxu0 %v25
  %44 = vmatprep.subr.mxu0 0.0
  %45 = vmatpush1.msra.mxu0 %v26
  %46 = vmatprep.subr.mxu0 0.0
  %47 = vmatpush1.msra.mxu0 0.0
  %48 = vmatprep.subr.mxu0 0.0
  %49 = vmatpush1.msra.mxu0 0.0
  %50 = vmatprep.subr.mxu0 0.0
  %51 = vmatpush1.msra.mxu0 0.0
  %52 = vmatprep.subr.mxu0 0.0
  %53 = vmatpush1.msra.mxu0 0.0
  %54 = vmatprep.subr.mxu0 0.0
  %55 = vmatpush1.msra.mxu0 0.0
  %56 = vmatprep.subr.mxu0 0.0
  %57 = vmatpush1.msra.mxu0 0.0
  %58 = vmatprep.subr.mxu0 0.0
  %59 = vmatpush1.msra.mxu0 0.0
  %60 = vmatprep.subr.mxu0 0.0
  %61 = vmatpush1.msra.mxu0 0.0
  %62 = vmatprep.subr.mxu0 0.0
  %63 = vmatpush1.msra.mxu0 0.0
  %64 = vmatprep.subr.mxu0 0.0
  %65 = vmatpush1.msra.mxu0 0.0
  %66 = vmatprep.subr.mxu0 0.0
  %67 = vmatpush1.msra.mxu0 0.0
  %68 = vmatprep.subr.mxu0 0.0
  %69 = vmatpush1.msra.mxu0 0.0
  %70 = vmatprep.subr.mxu0 0.0
  %71 = vmatpush1.msra.mxu0 0.0
  %72 = vmatprep.subr.mxu0 0.0
  %73 = vmatpush1.msra.mxu0 0.0
  %74 = vmatprep.subr.mxu0 0.0
  %75 = vmatpush1.msra.mxu0 0.0
  %76 = vmatprep.subr.mxu0 0.0
  %77 = vmatpush1.msra.mxu0 0.0
  %78 = vmatprep.subr.mxu0 0.0
  %79 = vmatpush1.msra.mxu0 0.0
  %80 = vmatprep.subr.mxu0 0.0
  %81 = vmatpush1.msra.mxu0 0.0
  %82 = vmatprep.subr.mxu0 0.0
  %83 = vmatpush1.msra.mxu0 0.0
  %84 = vmatprep.subr.mxu0 0.0
  %85 = vmatpush1.msra.mxu0 0.0
  %86 = vmatprep.subr.mxu0 0.0
  %87 = vmatpush1.msra.mxu0 0.0
  %88 = vmatprep.subr.mxu0 0.0
  %89 = vmatpush1.msra.mxu0 0.0
  %90 = vmatprep.subr.mxu0 0.0
  %91 = vmatpush1.msra.mxu0 0.0
  %92 = vmatprep.subr.mxu0 0.0
  %93 = vmatpush1.msra.mxu0 0.0
  %94 = vmatprep.subr.mxu0 0.0
  %95 = vmatpush1.msra.mxu0 0.0
  %96 = vmatprep.subr.mxu0 0.0
  %97 = vmatpush1.msra.mxu0 0.0
  %98 = vmatprep.subr.mxu0 0.0
  %99 = vmatpush1.msra.mxu0 0.0
  %100 = vmatprep.subr.mxu0 0.0
  %101 = vmatpush1.msra.mxu0 0.0
  %102 = vmatprep.mubr.f32.mxu0 0.0
  %103 = vmatmul.mubr.f32.gmra.mrb[0].mxu0 %v36
  %v104 = vpop.f32.mrb[0].mxu0
  %v105 = vadd.f32 %v33, %v104
  %v106 = vpop.f32.mrb[0].mxu0
  %107 = vdwg.mxu0
  %v108 = vmax.f32 %v105, 0.0
  %v109 = vadd.f32 %v108, 0.0
  %s110 = scalar_lea.vmem %s0, 8
  %v111 = vld [vmem:[%s110] sm:$0xff]
  %v113 = vsel %vm34, %v111, 0
  %115 = vmatprep.subr.mxu0 0.0
  %116 = vmatpush1.msra.mxu0 %v23
  %117 = vmatprep.subr.mxu0 0.0
  %118 = vmatpush1.msra.mxu0 %v24
  %119 = vmatprep.subr.mxu0 0.0
  %120 = vmatpush1.msra.mxu0 %v25
  %121 = vmatprep.subr.mxu0 0.0
  %122 = vmatpush1.msra.mxu0 %v26
  %123 = vmatprep.subr.mxu0 0.0
  %124 = vmatpush1.msra.mxu0 0.0
  %125 = vmatprep.subr.mxu0 0.0
  %126 = vmatpush1.msra.mxu0 0.0
  %127 = vmatprep.subr.mxu0 0.0
  %128 = vmatpush1.msra.mxu0 0.0
  %129 = vmatprep.subr.mxu0 0.0
  %130 = vmatpush1.msra.mxu0 0.0
  %131 = vmatprep.subr.mxu0 0.0
  %132 = vmatpush1.msra.mxu0 0.0
  %133 = vmatprep.subr.mxu0 0.0
  %134 = vmatpush1.msra.mxu0 0.0
  %135 = vmatprep.subr.mxu0 0.0
  %136 = vmatpush1.msra.mxu0 0.0
  %137 = vmatprep.subr.mxu0 0.0
  %138 = vmatpush1.msra.mxu0 0.0
  %139 = vmatprep.subr.mxu0 0.0
  %140 = vmatpush1.msra.mxu0 0.0
  %141 = vmatprep.subr.mxu0 0.0
  %142 = vmatpush1.msra.mxu0 0.0
  %143 = vmatprep.subr.mxu0 0.0
  %144 = vmatpush1.msra.mxu0 0.0
  %145 = vmatprep.subr.mxu0 0.0
  %146 = vmatpush1.msra.mxu0 0.0
  %147 = vmatprep.subr.mxu0 0.0
  %148 = vmatpush1.msra.mxu0 0.0
  %149 = vmatprep.subr.mxu0 0.0
  %150 = vmatpush1.msra.mxu0 0.0
  %151 = vmatprep.subr.mxu0 0.0
  %152 = vmatpush1.msra.mxu0 0.0
  %153 = vmatprep.subr.mxu0 0.0
  %154 = vmatpush1.msra.mxu0 0.0
  %155 = vmatprep.subr.mxu0 0.0
  %156 = vmatpush1.msra.mxu0 0.0
  %157 = vmatprep.subr.mxu0 0.0
  %158 = vmatpush1.msra.mxu0 0.0
  %159 = vmatprep.subr.mxu0 0.0
  %160 = vmatpush1.msra.mxu0 0.0
  %161 = vmatprep.subr.mxu0 0.0
  %162 = vmatpush1.msra.mxu0 0.0
  %163 = vmatprep.subr.mxu0 0.0
  %164 = vmatpush1.msra.mxu0 0.0
  %165 = vmatprep.subr.mxu0 0.0
  %166 = vmatpush1.msra.mxu0 0.0
  %167 = vmatprep.subr.mxu0 0.0
  %168 = vmatpush1.msra.mxu0 0.0
  %169 = vmatprep.subr.mxu0 0.0
  %170 = vmatpush1.msra.mxu0 0.0
  %171 = vmatprep.subr.mxu0 0.0
  %172 = vmatpush1.msra.mxu0 0.0
  %173 = vmatprep.subr.mxu0 0.0
  %174 = vmatpush1.msra.mxu0 0.0
  %175 = vmatprep.subr.mxu0 0.0
  %176 = vmatpush1.msra.mxu0 0.0
  %177 = vmatprep.subr.mxu0 0.0
  %178 = vmatpush1.msra.mxu0 0.0
  %179 = vmatprep.mubr.f32.mxu0 0.0
  %180 = vmatmul.mubr.f32.gmra.mrb[0].mxu0 %v113
  %v181 = vpop.f32.mrb[0].mxu0
  %v182 = vadd.f32 %v33, %v181
  %v183 = vpop.f32.mrb[0].mxu0
  %184 = vdwg.mxu0
  %v185 = vmax.f32 %v182, 0.0
  %v186 = vadd.f32 %v109, %v185
  %s187 = scalar_lea.vmem %s0, 16
  %v188 = vld [vmem:[%s187] sm:$0xff]
  %v190 = vsel %vm34, %v188, 0
  %192 = vmatprep.subr.mxu0 0.0
  %193 = vmatpush1.msra.mxu0 %v23
  %194 = vmatprep.subr.mxu0 0.0
  %195 = vmatpush1.msra.mxu0 %v24
  %196 = vmatprep.subr.mxu0 0.0
  %197 = vmatpush1.msra.mxu0 %v25
  %198 = vmatprep.subr.mxu0 0.0
  %199 = vmatpush1.msra.mxu0 %v26
  %200 = vmatprep.subr.mxu0 0.0
  %201 = vmatpush1.msra.mxu0 0.0
  %202 = vmatprep.subr.mxu0 0.0
  %203 = vmatpush1.msra.mxu0 0.0
  %204 = vmatprep.subr.mxu0 0.0
  %205 = vmatpush1.msra.mxu0 0.0
  %206 = vmatprep.subr.mxu0 0.0
  %207 = vmatpush1.msra.mxu0 0.0
  %208 = vmatprep.subr.mxu0 0.0
  %209 = vmatpush1.msra.mxu0 0.0
  %210 = vmatprep.subr.mxu0 0.0
  %211 = vmatpush1.msra.mxu0 0.0
  %212 = vmatprep.subr.mxu0 0.0
  %213 = vmatpush1.msra.mxu0 0.0
  %214 = vmatprep.subr.mxu0 0.0
  %215 = vmatpush1.msra.mxu0 0.0
  %216 = vmatprep.subr.mxu0 0.0
  %217 = vmatpush1.msra.mxu0 0.0
  %218 = vmatprep.subr.mxu0 0.0
  %219 = vmatpush1.msra.mxu0 0.0
  %220 = vmatprep.subr.mxu0 0.0
  %221 = vmatpush1.msra.mxu0 0.0
  %222 = vmatprep.subr.mxu0 0.0
  %223 = vmatpush1.msra.mxu0 0.0
  %224 = vmatprep.subr.mxu0 0.0
  %225 = vmatpush1.msra.mxu0 0.0
  %226 = vmatprep.subr.mxu0 0.0
  %227 = vmatpush1.msra.mxu0 0.0
  %228 = vmatprep.subr.mxu0 0.0
  %229 = vmatpush1.msra.mxu0 0.0
  %230 = vmatprep.subr.mxu0 0.0
  %231 = vmatpush1.msra.mxu0 0.0
  %232 = vmatprep.subr.mxu0 0.0
  %233 = vmatpush1.msra.mxu0 0.0
  %234 = vmatprep.subr.mxu0 0.0
  %235 = vmatpush1.msra.mxu0 0.0
  %236 = vmatprep.subr.mxu0 0.0
  %237 = vmatpush1.msra.mxu0 0.0
  %238 = vmatprep.subr.mxu0 0.0
  %239 = vmatpush1.msra.mxu0 0.0
  %240 = vmatprep.subr.mxu0 0.0
  %241 = vmatpush1.msra.mxu0 0.0
  %242 = vmatprep.subr.mxu0 0.0
  %243 = vmatpush1.msra.mxu0 0.0
  %244 = vmatprep.subr.mxu0 0.0
  %245 = vmatpush1.msra.mxu0 0.0
  %246 = vmatprep.subr.mxu0 0.0
  %247 = vmatpush1.msra.mxu0 0.0
  %248 = vmatprep.subr.mxu0 0.0
  %249 = vmatpush1.msra.mxu0 0.0
  %250 = vmatprep.subr.mxu0 0.0
  %251 = vmatpush1.msra.mxu0 0.0
  %252 = vmatprep.subr.mxu0 0.0
  %253 = vmatpush1.msra.mxu0 0.0
  %254 = vmatprep.subr.mxu0 0.0
  %255 = vmatpush1.msra.mxu0 0.0
  %256 = vmatprep.mubr.f32.mxu0 0.0
  %257 = vmatmul.mubr.f32.gmra.mrb[0].mxu0 %v190
  %v258 = vpop.f32.mrb[0].mxu0
  %v259 = vadd.f32 %v33, %v258
  %v260 = vpop.f32.mrb[0].mxu0
  %261 = vdwg.mxu0
  %v262 = vmax.f32 %v259, 0.0
  %v263 = vadd.f32 %v186, %v262
  %s264 = scalar_lea.vmem %s0, 24
  %v265 = vld [vmem:[%s264] sm:$0xff]
  %v267 = vsel %vm34, %v265, 0
  %269 = vmatprep.subr.mxu0 0.0
  %270 = vmatpush1.msra.mxu0 %v23
  %271 = vmatprep.subr.mxu0 0.0
  %272 = vmatpush1.msra.mxu0 %v24
  %273 = vmatprep.subr.mxu0 0.0
  %274 = vmatpush1.msra.mxu0 %v25
  %275 = vmatprep.subr.mxu0 0.0
  %276 = vmatpush1.msra.mxu0 %v26
  %277 = vmatprep.subr.mxu0 0.0
  %278 = vmatpush1.msra.mxu0 0.0
  %279 = vmatprep.subr.mxu0 0.0
  %280 = vmatpush1.msra.mxu0 0.0
  %281 = vmatprep.subr.mxu0 0.0
  %282 = vmatpush1.msra.mxu0 0.0
  %283 = vmatprep.subr.mxu0 0.0
  %284 = vmatpush1.msra.mxu0 0.0
  %285 = vmatprep.subr.mxu0 0.0
  %286 = vmatpush1.msra.mxu0 0.0
  %287 = vmatprep.subr.mxu0 0.0
  %288 = vmatpush1.msra.mxu0 0.0
  %289 = vmatprep.subr.mxu0 0.0
  %290 = vmatpush1.msra.mxu0 0.0
  %291 = vmatprep.subr.mxu0 0.0
  %292 = vmatpush1.msra.mxu0 0.0
  %293 = vmatprep.subr.mxu0 0.0
  %294 = vmatpush1.msra.mxu0 0.0
  %295 = vmatprep.subr.mxu0 0.0
  %296 = vmatpush1.msra.mxu0 0.0
  %297 = vmatprep.subr.mxu0 0.0
  %298 = vmatpush1.msra.mxu0 0.0
  %299 = vmatprep.subr.mxu0 0.0
  %300 = vmatpush1.msra.mxu0 0.0
  %301 = vmatprep.subr.mxu0 0.0
  %302 = vmatpush1.msra.mxu0 0.0
  %303 = vmatprep.subr.mxu0 0.0
  %304 = vmatpush1.msra.mxu0 0.0
  %305 = vmatprep.subr.mxu0 0.0
  %306 = vmatpush1.msra.mxu0 0.0
  %307 = vmatprep.subr.mxu0 0.0
  %308 = vmatpush1.msra.mxu0 0.0
  %309 = vmatprep.subr.mxu0 0.0
  %310 = vmatpush1.msra.mxu0 0.0
  %311 = vmatprep.subr.mxu0 0.0
  %312 = vmatpush1.msra.mxu0 0.0
  %313 = vmatprep.subr.mxu0 0.0
  %314 = vmatpush1.msra.mxu0 0.0
  %315 = vmatprep.subr.mxu0 0.0
  %316 = vmatpush1.msra.mxu0 0.0
  %317 = vmatprep.subr.mxu0 0.0
  %318 = vmatpush1.msra.mxu0 0.0
  %319 = vmatprep.subr.mxu0 0.0
  %320 = vmatpush1.msra.mxu0 0.0
  %321 = vmatprep.subr.mxu0 0.0
  %322 = vmatpush1.msra.mxu0 0.0
  %323 = vmatprep.subr.mxu0 0.0
  %324 = vmatpush1.msra.mxu0 0.0
  %325 = vmatprep.subr.mxu0 0.0
  %326 = vmatpush1.msra.mxu0 0.0
  %327 = vmatprep.subr.mxu0 0.0
  %328 = vmatpush1.msra.mxu0 0.0
  %329 = vmatprep.subr.mxu0 0.0
  %330 = vmatpush1.msra.mxu0 0.0
  %331 = vmatprep.subr.mxu0 0.0
  %332 = vmatpush1.msra.mxu0 0.0
  %333 = vmatprep.mubr.f32.mxu0 0.0
  %334 = vmatmul.mubr.f32.gmra.mrb[0].mxu0 %v267
  %v335 = vpop.f32.mrb[0].mxu0
  %v336 = vadd.f32 %v33, %v335
  %v337 = vpop.f32.mrb[0].mxu0
  %338 = vdwg.mxu0
  %v339 = vmax.f32 %v336, 0.0
  %v340 = vadd.f32 %v263, %v339
  %s341 = scalar_lea.vmem %s0, 32
  %v342 = vld [vmem:[%s341] sm:$0xff]
  %v344 = vsel %vm34, %v342, 0
  %346 = vmatprep.subr.mxu0 0.0
  %347 = vmatpush1.msra.mxu0 %v23
  %348 = vmatprep.subr.mxu0 0.0
  %349 = vmatpush1.msra.mxu0 %v24
  %350 = vmatprep.subr.mxu0 0.0
  %351 = vmatpush1.msra.mxu0 %v25
  %352 = vmatprep.subr.mxu0 0.0
  %353 = vmatpush1.msra.mxu0 %v26
  %354 = vmatprep.subr.mxu0 0.0
  %355 = vmatpush1.msra.mxu0 0.0
  %356 = vmatprep.subr.mxu0 0.0
  %357 = vmatpush1.msra.mxu0 0.0
  %358 = vmatprep.subr.mxu0 0.0
  %359 = vmatpush1.msra.mxu0 0.0
  %360 = vmatprep.subr.mxu0 0.0
  %361 = vmatpush1.msra.mxu0 0.0
  %362 = vmatprep.subr.mxu0 0.0
  %363 = vmatpush1.msra.mxu0 0.0
  %364 = vmatprep.subr.mxu0 0.0
  %365 = vmatpush1.msra.mxu0 0.0
  %366 = vmatprep.subr.mxu0 0.0
  %367 = vmatpush1.msra.mxu0 0.0
  %368 = vmatprep.subr.mxu0 0.0
  %369 = vmatpush1.msra.mxu0 0.0
  %370 = vmatprep.subr.mxu0 0.0
  %371 = vmatpush1.msra.mxu0 0.0
  %372 = vmatprep.subr.mxu0 0.0
  %373 = vmatpush1.msra.mxu0 0.0
  %374 = vmatprep.subr.mxu0 0.0
  %375 = vmatpush1.msra.mxu0 0.0
  %376 = vmatprep.subr.mxu0 0.0
  %377 = vmatpush1.msra.mxu0 0.0
  %378 = vmatprep.subr.mxu0 0.0
  %379 = vmatpush1.msra.mxu0 0.0
  %380 = vmatprep.subr.mxu0 0.0
  %381 = vmatpush1.msra.mxu0 0.0
  %382 = vmatprep.subr.mxu0 0.0
  %383 = vmatpush1.msra.mxu0 0.0
  %384 = vmatprep.subr.mxu0 0.0
  %385 = vmatpush1.msra.mxu0 0.0
  %386 = vmatprep.subr.mxu0 0.0
  %387 = vmatpush1.msra.mxu0 0.0
  %388 = vmatprep.subr.mxu0 0.0
  %389 = vmatpush1.msra.mxu0 0.0
  %390 = vmatprep.subr.mxu0 0.0
  %391 = vmatpush1.msra.mxu0 0.0
  %392 = vmatprep.subr.mxu0 0.0
  %393 = vmatpush1.msra.mxu0 0.0
  %394 = vmatprep.subr.mxu0 0.0
  %395 = vmatpush1.msra.mxu0 0.0
  %396 = vmatprep.subr.mxu0 0.0
  %397 = vmatpush1.msra.mxu0 0.0
  %398 = vmatprep.subr.mxu0 0.0
  %399 = vmatpush1.msra.mxu0 0.0
  %400 = vmatprep.subr.mxu0 0.0
  %401 = vmatpush1.msra.mxu0 0.0
  %402 = vmatprep.subr.mxu0 0.0
  %403 = vmatpush1.msra.mxu0 0.0
  %404 = vmatprep.subr.mxu0 0.0
  %405 = vmatpush1.msra.mxu0 0.0
  %406 = vmatprep.subr.mxu0 0.0
  %407 = vmatpush1.msra.mxu0 0.0
  %408 = vmatprep.subr.mxu0 0.0
  %409 = vmatpush1.msra.mxu0 0.0
  %410 = vmatprep.mubr.f32.mxu0 0.0
  %411 = vmatmul.mubr.f32.gmra.mrb[0].mxu0 %v344
  %v412 = vpop.f32.mrb[0].mxu0
  %v413 = vadd.f32 %v33, %v412
  %v414 = vpop.f32.mrb[0].mxu0
  %415 = vdwg.mxu0
  %v416 = vmax.f32 %v413, 0.0
  %v417 = vadd.f32 %v416, 0.0
  %s418 = scalar_lea.vmem %s0, 40
  %v419 = vld [vmem:[%s418] sm:$0xff]
  %v421 = vsel %vm34, %v419, 0
  %423 = vmatprep.subr.mxu0 0.0
  %424 = vmatpush1.msra.mxu0 %v23
  %425 = vmatprep.subr.mxu0 0.0
  %426 = vmatpush1.msra.mxu0 %v24
  %427 = vmatprep.subr.mxu0 0.0
  %428 = vmatpush1.msra.mxu0 %v25
  %429 = vmatprep.subr.mxu0 0.0
  %430 = vmatpush1.msra.mxu0 %v26
  %431 = vmatprep.subr.mxu0 0.0
  %432 = vmatpush1.msra.mxu0 0.0
  %433 = vmatprep.subr.mxu0 0.0
  %434 = vmatpush1.msra.mxu0 0.0
  %435 = vmatprep.subr.mxu0 0.0
  %436 = vmatpush1.msra.mxu0 0.0
  %437 = vmatprep.subr.mxu0 0.0
  %438 = vmatpush1.msra.mxu0 0.0
  %439 = vmatprep.subr.mxu0 0.0
  %440 = vmatpush1.msra.mxu0 0.0
  %441 = vmatprep.subr.mxu0 0.0
  %442 = vmatpush1.msra.mxu0 0.0
  %443 = vmatprep.subr.mxu0 0.0
  %444 = vmatpush1.msra.mxu0 0.0
  %445 = vmatprep.subr.mxu0 0.0
  %446 = vmatpush1.msra.mxu0 0.0
  %447 = vmatprep.subr.mxu0 0.0
  %448 = vmatpush1.msra.mxu0 0.0
  %449 = vmatprep.subr.mxu0 0.0
  %450 = vmatpush1.msra.mxu0 0.0
  %451 = vmatprep.subr.mxu0 0.0
  %452 = vmatpush1.msra.mxu0 0.0
  %453 = vmatprep.subr.mxu0 0.0
  %454 = vmatpush1.msra.mxu0 0.0
  %455 = vmatprep.subr.mxu0 0.0
  %456 = vmatpush1.msra.mxu0 0.0
  %457 = vmatprep.subr.mxu0 0.0
  %458 = vmatpush1.msra.mxu0 0.0
  %459 = vmatprep.subr.mxu0 0.0
  %460 = vmatpush1.msra.mxu0 0.0
  %461 = vmatprep.subr.mxu0 0.0
  %462 = vmatpush1.msra.mxu0 0.0
  %463 = vmatprep.subr.mxu0 0.0
  %464 = vmatpush1.msra.mxu0 0.0
  %465 = vmatprep.subr.mxu0 0.0
  %466 = vmatpush1.msra.mxu0 0.0
  %467 = vmatprep.subr.mxu0 0.0
  %468 = vmatpush1.msra.mxu0 0.0
  %469 = vmatprep.subr.mxu0 0.0
  %470 = vmatpush1.msra.mxu0 0.0
  %471 = vmatprep.subr.mxu0 0.0
  %472 = vmatpush1.msra.mxu0 0.0
  %473 = vmatprep.subr.mxu0 0.0
  %474 = vmatpush1.msra.mxu0 0.0
  %475 = vmatprep.subr.mxu0 0.0
  %476 = vmatpush1.msra.mxu0 0.0
  %477 = vmatprep.subr.mxu0 0.0
  %478 = vmatpush1.msra.mxu0 0.0
  %479 = vmatprep.subr.mxu0 0.0
  %480 = vmatpush1.msra.mxu0 0.0
  %481 = vmatprep.subr.mxu0 0.0
  %482 = vmatpush1.msra.mxu0 0.0
  %483 = vmatprep.subr.mxu0 0.0
  %484 = vmatpush1.msra.mxu0 0.0
  %485 = vmatprep.subr.mxu0 0.0
  %486 = vmatpush1.msra.mxu0 0.0
  %487 = vmatprep.mubr.f32.mxu0 0.0
  %488 = vmatmul.mubr.f32.gmra.mrb[0].mxu0 %v421
  %v489 = vpop.f32.mrb[0].mxu0
  %v490 = vadd.f32 %v33, %v489
  %v491 = vpop.f32.mrb[0].mxu0
  %492 = vdwg.mxu0
  %v493 = vmax.f32 %v490, 0.0
  %v494 = vadd.f32 %v417, %v493
  %s495 = scalar_lea.vmem %s0, 48
  %v496 = vld [vmem:[%s495] sm:$0xff]
  %v498 = vsel %vm34, %v496, 0
  %500 = vmatprep.subr.mxu0 0.0
  %501 = vmatpush1.msra.mxu0 %v23
  %502 = vmatprep.subr.mxu0 0.0
  %503 = vmatpush1.msra.mxu0 %v24
  %504 = vmatprep.subr.mxu0 0.0
  %505 = vmatpush1.msra.mxu0 %v25
  %506 = vmatprep.subr.mxu0 0.0
  %507 = vmatpush1.msra.mxu0 %v26
  %508 = vmatprep.subr.mxu0 0.0
  %509 = vmatpush1.msra.mxu0 0.0
  %510 = vmatprep.subr.mxu0 0.0
  %511 = vmatpush1.msra.mxu0 0.0
  %512 = vmatprep.subr.mxu0 0.0
  %513 = vmatpush1.msra.mxu0 0.0
  %514 = vmatprep.subr.mxu0 0.0
  %515 = vmatpush1.msra.mxu0 0.0
  %516 = vmatprep.subr.mxu0 0.0
  %517 = vmatpush1.msra.mxu0 0.0
  %518 = vmatprep.subr.mxu0 0.0
  %519 = vmatpush1.msra.mxu0 0.0
  %520 = vmatprep.subr.mxu0 0.0
  %521 = vmatpush1.msra.mxu0 0.0
  %522 = vmatprep.subr.mxu0 0.0
  %523 = vmatpush1.msra.mxu0 0.0
  %524 = vmatprep.subr.mxu0 0.0
  %525 = vmatpush1.msra.mxu0 0.0
  %526 = vmatprep.subr.mxu0 0.0
  %527 = vmatpush1.msra.mxu0 0.0
  %528 = vmatprep.subr.mxu0 0.0
  %529 = vmatpush1.msra.mxu0 0.0
  %530 = vmatprep.subr.mxu0 0.0
  %531 = vmatpush1.msra.mxu0 0.0
  %532 = vmatprep.subr.mxu0 0.0
  %533 = vmatpush1.msra.mxu0 0.0
  %534 = vmatprep.subr.mxu0 0.0
  %535 = vmatpush1.msra.mxu0 0.0
  %536 = vmatprep.subr.mxu0 0.0
  %537 = vmatpush1.msra.mxu0 0.0
  %538 = vmatprep.subr.mxu0 0.0
  %539 = vmatpush1.msra.mxu0 0.0
  %540 = vmatprep.subr.mxu0 0.0
  %541 = vmatpush1.msra.mxu0 0.0
  %542 = vmatprep.subr.mxu0 0.0
  %543 = vmatpush1.msra.mxu0 0.0
  %544 = vmatprep.subr.mxu0 0.0
  %545 = vmatpush1.msra.mxu0 0.0
  %546 = vmatprep.subr.mxu0 0.0
  %547 = vmatpush1.msra.mxu0 0.0
  %548 = vmatprep.subr.mxu0 0.0
  %549 = vmatpush1.msra.mxu0 0.0
  %550 = vmatprep.subr.mxu0 0.0
  %551 = vmatpush1.msra.mxu0 0.0
  %552 = vmatprep.subr.mxu0 0.0
  %553 = vmatpush1.msra.mxu0 0.0
  %554 = vmatprep.subr.mxu0 0.0
  %555 = vmatpush1.msra.mxu0 0.0
  %556 = vmatprep.subr.mxu0 0.0
  %557 = vmatpush1.msra.mxu0 0.0
  %558 = vmatprep.subr.mxu0 0.0
  %559 = vmatpush1.msra.mxu0 0.0
  %560 = vmatprep.subr.mxu0 0.0
  %561 = vmatpush1.msra.mxu0 0.0
  %562 = vmatprep.subr.mxu0 0.0
  %563 = vmatpush1.msra.mxu0 0.0
  %564 = vmatprep.mubr.f32.mxu0 0.0
  %565 = vmatmul.mubr.f32.gmra.mrb[0].mxu0 %v498
  %v566 = vpop.f32.mrb[0].mxu0
  %v567 = vadd.f32 %v33, %v566
  %v568 = vpop.f32.mrb[0].mxu0
  %569 = vdwg.mxu0
  %v570 = vmax.f32 %v567, 0.0
  %v571 = vadd.f32 %v494, %v570
  %s572 = scalar_lea.vmem %s0, 56
  %v573 = vld [vmem:[%s572] sm:$0xff]
  %v575 = vsel %vm34, %v573, 0
  %577 = vmatprep.subr.mxu0 0.0
  %578 = vmatpush1.msra.mxu0 %v23
  %579 = vmatprep.subr.mxu0 0.0
  %580 = vmatpush1.msra.mxu0 %v24
  %581 = vmatprep.subr.mxu0 0.0
  %582 = vmatpush1.msra.mxu0 %v25
  %583 = vmatprep.subr.mxu0 0.0
  %584 = vmatpush1.msra.mxu0 %v26
  %585 = vmatprep.subr.mxu0 0.0
  %586 = vmatpush1.msra.mxu0 0.0
  %587 = vmatprep.subr.mxu0 0.0
  %588 = vmatpush1.msra.mxu0 0.0
  %589 = vmatprep.subr.mxu0 0.0
  %590 = vmatpush1.msra.mxu0 0.0
  %591 = vmatprep.subr.mxu0 0.0
  %592 = vmatpush1.msra.mxu0 0.0
  %593 = vmatprep.subr.mxu0 0.0
  %594 = vmatpush1.msra.mxu0 0.0
  %595 = vmatprep.subr.mxu0 0.0
  %596 = vmatpush1.msra.mxu0 0.0
  %597 = vmatprep.subr.mxu0 0.0
  %598 = vmatpush1.msra.mxu0 0.0
  %599 = vmatprep.subr.mxu0 0.0
  %600 = vmatpush1.msra.mxu0 0.0
  %601 = vmatprep.subr.mxu0 0.0
  %602 = vmatpush1.msra.mxu0 0.0
  %603 = vmatprep.subr.mxu0 0.0
  %604 = vmatpush1.msra.mxu0 0.0
  %605 = vmatprep.subr.mxu0 0.0
  %606 = vmatpush1.msra.mxu0 0.0
  %607 = vmatprep.subr.mxu0 0.0
  %608 = vmatpush1.msra.mxu0 0.0
  %609 = vmatprep.subr.mxu0 0.0
  %610 = vmatpush1.msra.mxu0 0.0
  %611 = vmatprep.subr.mxu0 0.0
  %612 = vmatpush1.msra.mxu0 0.0
  %613 = vmatprep.subr.mxu0 0.0
  %614 = vmatpush1.msra.mxu0 0.0
  %615 = vmatprep.subr.mxu0 0.0
  %616 = vmatpush1.msra.mxu0 0.0
  %617 = vmatprep.subr.mxu0 0.0
  %618 = vmatpush1.msra.mxu0 0.0
  %619 = vmatprep.subr.mxu0 0.0
  %620 = vmatpush1.msra.mxu0 0.0
  %621 = vmatprep.subr.mxu0 0.0
  %622 = vmatpush1.msra.mxu0 0.0
  %623 = vmatprep.subr.mxu0 0.0
  %624 = vmatpush1.msra.mxu0 0.0
  %625 = vmatprep.subr.mxu0 0.0
  %626 = vmatpush1.msra.mxu0 0.0
  %627 = vmatprep.subr.mxu0 0.0
  %628 = vmatpush1.msra.mxu0 0.0
  %629 = vmatprep.subr.mxu0 0.0
  %630 = vmatpush1.msra.mxu0 0.0
  %631 = vmatprep.subr.mxu0 0.0
  %632 = vmatpush1.msra.mxu0 0.0
  %633 = vmatprep.subr.mxu0 0.0
  %634 = vmatpush1.msra.mxu0 0.0
  %635 = vmatprep.subr.mxu0 0.0
  %636 = vmatpush1.msra.mxu0 0.0
  %637 = vmatprep.subr.mxu0 0.0
  %638 = vmatpush1.msra.mxu0 0.0
  %639 = vmatprep.subr.mxu0 0.0
  %640 = vmatpush1.msra.mxu0 0.0
  %641 = vmatprep.mubr.f32.mxu0 0.0
  %642 = vmatmul.mubr.f32.gmra.mrb[0].mxu0 %v575
  %v643 = vpop.f32.mrb[0].mxu0
  %v644 = vadd.f32 %v33, %v643
  %v645 = vpop.f32.mrb[0].mxu0
  %646 = vdwg.mxu0
  %v647 = vmax.f32 %v644, 0.0
  %v648 = vadd.f32 %v571, %v647
  %v649 = vld [vmem:[%s2 + $0x1] sm:$0x1]
  %v650 = vlaneseq
  %v651 = vshrl.u32 %v650, 7
  %v652 = vsub.s32 0, %v651
  %v653 = vrot.slane %v649, %v652
  %v654 = vmul.f32 %v340, %v653
  %v655 = vld [vmem:[%s2 + $0x2] sm:$0x1]
  %v656 = vlaneseq
  %v657 = vshrl.u32 %v656, 7
  %v658 = vsub.s32 0, %v657
  %v659 = vrot.slane %v655, %v658
  %v660 = vmul.f32 %v648, %v659
  %v661 = vadd.f32 %v654, %v660
  %v662 = vld [vmem:[%s3] sm:$0xff]
  %v663 = vld [vmem:[%s3 + $0x8] sm:$0xff]
  %v664 = vld [vmem:[%s3 + $0x10] sm:$0xff]
  %v665 = vld [vmem:[%s3 + $0x18] sm:$0xff]
  %v666 = vld [vmem:[%s3 + $0x20] sm:$0xff]
  %v667 = vld [vmem:[%s3 + $0x28] sm:$0xff]
  %v668 = vld [vmem:[%s3 + $0x30] sm:$0xff]
  %v669 = vld [vmem:[%s3 + $0x38] sm:$0xff]
  %v670 = vld [vmem:[%s3 + $0x40] sm:$0xff]
  %v671 = vlaneseq
  %v672 = vshrl.u32 %v671, 7
  %v673 = vsub.s32 0, %v672
  %v674 = vrot.slane %v28, %v673
  %vm675 = vcmask 588800
  %v677 = vsel %vm675, %v661, 0
  %679 = vmatprep.subr.mxu0 0.0
  %680 = vmatpush1.msra.mxu0 %v662
  %681 = vmatprep.subr.mxu0 0.0
  %682 = vmatpush1.msra.mxu0 %v663
  %683 = vmatprep.subr.mxu0 0.0
  %684 = vmatpush1.msra.mxu0 %v664
  %685 = vmatprep.subr.mxu0 0.0
  %686 = vmatpush1.msra.mxu0 %v665
  %687 = vmatprep.subr.mxu0 0.0
  %688 = vmatpush1.msra.mxu0 %v666
  %689 = vmatprep.subr.mxu0 0.0
  %690 = vmatpush1.msra.mxu0 %v667
  %691 = vmatprep.subr.mxu0 0.0
  %692 = vmatpush1.msra.mxu0 %v668
  %693 = vmatprep.subr.mxu0 0.0
  %694 = vmatpush1.msra.mxu0 %v669
  %695 = vmatprep.subr.mxu0 0.0
  %696 = vmatpush1.msra.mxu0 %v670
  %697 = vmatprep.subr.mxu0 0.0
  %698 = vmatpush1.msra.mxu0 0.0
  %699 = vmatprep.subr.mxu0 0.0
  %700 = vmatpush1.msra.mxu0 0.0
  %701 = vmatprep.subr.mxu0 0.0
  %702 = vmatpush1.msra.mxu0 0.0
  %703 = vmatprep.subr.mxu0 0.0
  %704 = vmatpush1.msra.mxu0 0.0
  %705 = vmatprep.subr.mxu0 0.0
  %706 = vmatpush1.msra.mxu0 0.0
  %707 = vmatprep.subr.mxu0 0.0
  %708 = vmatpush1.msra.mxu0 0.0
  %709 = vmatprep.subr.mxu0 0.0
  %710 = vmatpush1.msra.mxu0 0.0
  %711 = vmatprep.subr.mxu0 0.0
  %712 = vmatpush1.msra.mxu0 0.0
  %713 = vmatprep.subr.mxu0 0.0
  %714 = vmatpush1.msra.mxu0 0.0
  %715 = vmatprep.subr.mxu0 0.0
  %716 = vmatpush1.msra.mxu0 0.0
  %717 = vmatprep.subr.mxu0 0.0
  %718 = vmatpush1.msra.mxu0 0.0
  %719 = vmatprep.subr.mxu0 0.0
  %720 = vmatpush1.msra.mxu0 0.0
  %721 = vmatprep.subr.mxu0 0.0
  %722 = vmatpush1.msra.mxu0 0.0
  %723 = vmatprep.subr.mxu0 0.0
  %724 = vmatpush1.msra.mxu0 0.0
  %725 = vmatprep.subr.mxu0 0.0
  %726 = vmatpush1.msra.mxu0 0.0
  %727 = vmatprep.subr.mxu0 0.0
  %728 = vmatpush1.msra.mxu0 0.0
  %729 = vmatprep.subr.mxu0 0.0
  %730 = vmatpush1.msra.mxu0 0.0
  %731 = vmatprep.subr.mxu0 0.0
  %732 = vmatpush1.msra.mxu0 0.0
  %733 = vmatprep.subr.mxu0 0.0
  %734 = vmatpush1.msra.mxu0 0.0
  %735 = vmatprep.subr.mxu0 0.0
  %736 = vmatpush1.msra.mxu0 0.0
  %737 = vmatprep.subr.mxu0 0.0
  %738 = vmatpush1.msra.mxu0 0.0
  %739 = vmatprep.subr.mxu0 0.0
  %740 = vmatpush1.msra.mxu0 0.0
  %741 = vmatprep.subr.mxu0 0.0
  %742 = vmatpush1.msra.mxu0 0.0
  %743 = vmatprep.mubr.f32.mxu0 0.0
  %744 = vmatmul.mubr.f32.gmra.mrb[0].mxu0 %v677
  %v745 = vpop.f32.mrb[0].mxu0
  %v746 = vadd.f32 %v674, %v745
  %v747 = vpop.f32.mrb[0].mxu0
  %748 = vdwg.mxu0
  %v749 = vld [vmem:[%s5] sm:$0xff]
  %v750 = vld [vmem:[%s5 + $0x8] sm:$0xff]
  %v751 = vld [vmem:[%s5 + $0x10] sm:$0xff]
  %v752 = vld [vmem:[%s5 + $0x18] sm:$0xff]
  %v753 = vld [vmem:[%s5 + $0x20] sm:$0xff]
  %v754 = vld [vmem:[%s5 + $0x28] sm:$0xff]
  %v755 = vlaneseq
  %v756 = vshrl.u32 %v755, 7
  %v757 = vsub.s32 1, %v756
  %v758 = vrot.slane %v28, %v757
  %vm759 = vcmask 392192
  %v761 = vsel %vm759, %v746, 0
  %763 = vmatprep.subr.mxu0 0.0
  %764 = vmatpush1.msra.mxu0 %v749
  %765 = vmatprep.subr.mxu0 0.0
  %766 = vmatpush1.msra.mxu0 %v750
  %767 = vmatprep.subr.mxu0 0.0
  %768 = vmatpush1.msra.mxu0 %v751
  %769 = vmatprep.subr.mxu0 0.0
  %770 = vmatpush1.msra.mxu0 %v752
  %771 = vmatprep.subr.mxu0 0.0
  %772 = vmatpush1.msra.mxu0 %v753
  %773 = vmatprep.subr.mxu0 0.0
  %774 = vmatpush1.msra.mxu0 %v754
  %775 = vmatprep.subr.mxu0 0.0
  %776 = vmatpush1.msra.mxu0 0.0
  %777 = vmatprep.subr.mxu0 0.0
  %778 = vmatpush1.msra.mxu0 0.0
  %779 = vmatprep.subr.mxu0 0.0
  %780 = vmatpush1.msra.mxu0 0.0
  %781 = vmatprep.subr.mxu0 0.0
  %782 = vmatpush1.msra.mxu0 0.0
  %783 = vmatprep.subr.mxu0 0.0
  %784 = vmatpush1.msra.mxu0 0.0
  %785 = vmatprep.subr.mxu0 0.0
  %786 = vmatpush1.msra.mxu0 0.0
  %787 = vmatprep.subr.mxu0 0.0
  %788 = vmatpush1.msra.mxu0 0.0
  %789 = vmatprep.subr.mxu0 0.0
  %790 = vmatpush1.msra.mxu0 0.0
  %791 = vmatprep.subr.mxu0 0.0
  %792 = vmatpush1.msra.mxu0 0.0
  %793 = vmatprep.subr.mxu0 0.0
  %794 = vmatpush1.msra.mxu0 0.0
  %795 = vmatprep.subr.mxu0 0.0
  %796 = vmatpush1.msra.mxu0 0.0
  %797 = vmatprep.subr.mxu0 0.0
  %798 = vmatpush1.msra.mxu0 0.0
  %799 = vmatprep.subr.mxu0 0.0
  %800 = vmatpush1.msra.mxu0 0.0
  %801 = vmatprep.subr.mxu0 0.0
  %802 = vmatpush1.msra.mxu0 0.0
  %803 = vmatprep.subr.mxu0 0.0
  %804 = vmatpush1.msra.mxu0 0.0
  %805 = vmatprep.subr.mxu0 0.0
  %806 = vmatpush1.msra.mxu0 0.0
  %807 = vmatprep.subr.mxu0 0.0
  %808 = vmatpush1.msra.mxu0 0.0
  %809 = vmatprep.subr.mxu0 0.0
  %810 = vmatpush1.msra.mxu0 0.0
  %811 = vmatprep.subr.mxu0 0.0
  %812 = vmatpush1.msra.mxu0 0.0
  %813 = vmatprep.subr.mxu0 0.0
  %814 = vmatpush1.msra.mxu0 0.0
  %815 = vmatprep.subr.mxu0 0.0
  %816 = vmatpush1.msra.mxu0 0.0
  %817 = vmatprep.subr.mxu0 0.0
  %818 = vmatpush1.msra.mxu0 0.0
  %819 = vmatprep.subr.mxu0 0.0
  %820 = vmatpush1.msra.mxu0 0.0
  %821 = vmatprep.subr.mxu0 0.0
  %822 = vmatpush1.msra.mxu0 0.0
  %823 = vmatprep.subr.mxu0 0.0
  %824 = vmatpush1.msra.mxu0 0.0
  %825 = vmatprep.subr.mxu0 0.0
  %826 = vmatpush1.msra.mxu0 0.0
  %827 = vmatprep.mubr.f32.mxu0 0.0
  %828 = vmatmul.mubr.f32.gmra.mrb[0].mxu0 %v761
  %v829 = vpop.f32.mrb[0].mxu0
  %v830 = vadd.f32 %v758, %v829
  %v831 = vpop.f32.mrb[0].mxu0
  %832 = vdwg.mxu0
  %v833 = vsel %vm759, %v830, 0.0
  %834 = vadd.xlane.f32.xlu0 %v833
  %v835 = vpop.xlane.xlu0 %834
  %v836 = vrcp.pop 48.0
  %v837 = vmul.f32 %v835, %v836
  %v838 = vsub.f32 %v830, %v837
  %v839 = vmul.f32 %v838, %v838
  %v840 = vsel %vm759, %v839, 0.0
  %841 = vadd.xlane.f32.xlu0 %v840
  %v842 = vpop.xlane.xlu0 %841
  %v843 = vmul.f32 %v842, %v836
  %v844 = vadd.f32 %v843, 1e-05
  %v845 = vrsqrt.pop %v844
  %v846 = vmul.f32 %v838, %v845
  %s847 = scalar_lea.vmem %s5, 48
  %v848 = vld [vmem:[%s847] sm:$0xff]
  %v849 = vld [vmem:[%s847 + $0x8] sm:$0xff]
  %v850 = vld [vmem:[%s847 + $0x10] sm:$0xff]
  %v851 = vld [vmem:[%s847 + $0x18] sm:$0xff]
  %v852 = vld [vmem:[%s847 + $0x20] sm:$0xff]
  %v853 = vld [vmem:[%s847 + $0x28] sm:$0xff]
  %v854 = vlaneseq
  %v855 = vshrl.u32 %v854, 7
  %v856 = vsub.s32 2, %v855
  %v857 = vrot.slane %v28, %v856
  %v859 = vsel %vm759, %v846, 0
  %861 = vmatprep.subr.mxu0 0.0
  %862 = vmatpush1.msra.mxu0 %v848
  %863 = vmatprep.subr.mxu0 0.0
  %864 = vmatpush1.msra.mxu0 %v849
  %865 = vmatprep.subr.mxu0 0.0
  %866 = vmatpush1.msra.mxu0 %v850
  %867 = vmatprep.subr.mxu0 0.0
  %868 = vmatpush1.msra.mxu0 %v851
  %869 = vmatprep.subr.mxu0 0.0
  %870 = vmatpush1.msra.mxu0 %v852
  %871 = vmatprep.subr.mxu0 0.0
  %872 = vmatpush1.msra.mxu0 %v853
  %873 = vmatprep.subr.mxu0 0.0
  %874 = vmatpush1.msra.mxu0 0.0
  %875 = vmatprep.subr.mxu0 0.0
  %876 = vmatpush1.msra.mxu0 0.0
  %877 = vmatprep.subr.mxu0 0.0
  %878 = vmatpush1.msra.mxu0 0.0
  %879 = vmatprep.subr.mxu0 0.0
  %880 = vmatpush1.msra.mxu0 0.0
  %881 = vmatprep.subr.mxu0 0.0
  %882 = vmatpush1.msra.mxu0 0.0
  %883 = vmatprep.subr.mxu0 0.0
  %884 = vmatpush1.msra.mxu0 0.0
  %885 = vmatprep.subr.mxu0 0.0
  %886 = vmatpush1.msra.mxu0 0.0
  %887 = vmatprep.subr.mxu0 0.0
  %888 = vmatpush1.msra.mxu0 0.0
  %889 = vmatprep.subr.mxu0 0.0
  %890 = vmatpush1.msra.mxu0 0.0
  %891 = vmatprep.subr.mxu0 0.0
  %892 = vmatpush1.msra.mxu0 0.0
  %893 = vmatprep.subr.mxu0 0.0
  %894 = vmatpush1.msra.mxu0 0.0
  %895 = vmatprep.subr.mxu0 0.0
  %896 = vmatpush1.msra.mxu0 0.0
  %897 = vmatprep.subr.mxu0 0.0
  %898 = vmatpush1.msra.mxu0 0.0
  %899 = vmatprep.subr.mxu0 0.0
  %900 = vmatpush1.msra.mxu0 0.0
  %901 = vmatprep.subr.mxu0 0.0
  %902 = vmatpush1.msra.mxu0 0.0
  %903 = vmatprep.subr.mxu0 0.0
  %904 = vmatpush1.msra.mxu0 0.0
  %905 = vmatprep.subr.mxu0 0.0
  %906 = vmatpush1.msra.mxu0 0.0
  %907 = vmatprep.subr.mxu0 0.0
  %908 = vmatpush1.msra.mxu0 0.0
  %909 = vmatprep.subr.mxu0 0.0
  %910 = vmatpush1.msra.mxu0 0.0
  %911 = vmatprep.subr.mxu0 0.0
  %912 = vmatpush1.msra.mxu0 0.0
  %913 = vmatprep.subr.mxu0 0.0
  %914 = vmatpush1.msra.mxu0 0.0
  %915 = vmatprep.subr.mxu0 0.0
  %916 = vmatpush1.msra.mxu0 0.0
  %917 = vmatprep.subr.mxu0 0.0
  %918 = vmatpush1.msra.mxu0 0.0
  %919 = vmatprep.subr.mxu0 0.0
  %920 = vmatpush1.msra.mxu0 0.0
  %921 = vmatprep.subr.mxu0 0.0
  %922 = vmatpush1.msra.mxu0 0.0
  %923 = vmatprep.subr.mxu0 0.0
  %924 = vmatpush1.msra.mxu0 0.0
  %925 = vmatprep.mubr.f32.mxu0 0.0
  %926 = vmatmul.mubr.f32.gmra.mrb[0].mxu0 %v859
  %v927 = vpop.f32.mrb[0].mxu0
  %v928 = vadd.f32 %v857, %v927
  %v929 = vpop.f32.mrb[0].mxu0
  %930 = vdwg.mxu0
  %v931 = vmax.f32 %v928, 0.0
  %s932 = scalar_lea.vmem %s5, 96
  %v933 = vld [vmem:[%s932] sm:$0xff]
  %v934 = vld [vmem:[%s932 + $0x8] sm:$0xff]
  %v935 = vld [vmem:[%s932 + $0x10] sm:$0xff]
  %v936 = vld [vmem:[%s932 + $0x18] sm:$0xff]
  %v937 = vld [vmem:[%s932 + $0x20] sm:$0xff]
  %v938 = vld [vmem:[%s932 + $0x28] sm:$0xff]
  %v939 = vlaneseq
  %v940 = vshrl.u32 %v939, 7
  %v941 = vsub.s32 3, %v940
  %v942 = vrot.slane %v28, %v941
  %v944 = vsel %vm759, %v931, 0
  %946 = vmatprep.subr.mxu0 0.0
  %947 = vmatpush1.msra.mxu0 %v933
  %948 = vmatprep.subr.mxu0 0.0
  %949 = vmatpush1.msra.mxu0 %v934
  %950 = vmatprep.subr.mxu0 0.0
  %951 = vmatpush1.msra.mxu0 %v935
  %952 = vmatprep.subr.mxu0 0.0
  %953 = vmatpush1.msra.mxu0 %v936
  %954 = vmatprep.subr.mxu0 0.0
  %955 = vmatpush1.msra.mxu0 %v937
  %956 = vmatprep.subr.mxu0 0.0
  %957 = vmatpush1.msra.mxu0 %v938
  %958 = vmatprep.subr.mxu0 0.0
  %959 = vmatpush1.msra.mxu0 0.0
  %960 = vmatprep.subr.mxu0 0.0
  %961 = vmatpush1.msra.mxu0 0.0
  %962 = vmatprep.subr.mxu0 0.0
  %963 = vmatpush1.msra.mxu0 0.0
  %964 = vmatprep.subr.mxu0 0.0
  %965 = vmatpush1.msra.mxu0 0.0
  %966 = vmatprep.subr.mxu0 0.0
  %967 = vmatpush1.msra.mxu0 0.0
  %968 = vmatprep.subr.mxu0 0.0
  %969 = vmatpush1.msra.mxu0 0.0
  %970 = vmatprep.subr.mxu0 0.0
  %971 = vmatpush1.msra.mxu0 0.0
  %972 = vmatprep.subr.mxu0 0.0
  %973 = vmatpush1.msra.mxu0 0.0
  %974 = vmatprep.subr.mxu0 0.0
  %975 = vmatpush1.msra.mxu0 0.0
  %976 = vmatprep.subr.mxu0 0.0
  %977 = vmatpush1.msra.mxu0 0.0
  %978 = vmatprep.subr.mxu0 0.0
  %979 = vmatpush1.msra.mxu0 0.0
  %980 = vmatprep.subr.mxu0 0.0
  %981 = vmatpush1.msra.mxu0 0.0
  %982 = vmatprep.subr.mxu0 0.0
  %983 = vmatpush1.msra.mxu0 0.0
  %984 = vmatprep.subr.mxu0 0.0
  %985 = vmatpush1.msra.mxu0 0.0
  %986 = vmatprep.subr.mxu0 0.0
  %987 = vmatpush1.msra.mxu0 0.0
  %988 = vmatprep.subr.mxu0 0.0
  %989 = vmatpush1.msra.mxu0 0.0
  %990 = vmatprep.subr.mxu0 0.0
  %991 = vmatpush1.msra.mxu0 0.0
  %992 = vmatprep.subr.mxu0 0.0
  %993 = vmatpush1.msra.mxu0 0.0
  %994 = vmatprep.subr.mxu0 0.0
  %995 = vmatpush1.msra.mxu0 0.0
  %996 = vmatprep.subr.mxu0 0.0
  %997 = vmatpush1.msra.mxu0 0.0
  %998 = vmatprep.subr.mxu0 0.0
  %999 = vmatpush1.msra.mxu0 0.0
  %1000 = vmatprep.subr.mxu0 0.0
  %1001 = vmatpush1.msra.mxu0 0.0
  %1002 = vmatprep.subr.mxu0 0.0
  %1003 = vmatpush1.msra.mxu0 0.0
  %1004 = vmatprep.subr.mxu0 0.0
  %1005 = vmatpush1.msra.mxu0 0.0
  %1006 = vmatprep.subr.mxu0 0.0
  %1007 = vmatpush1.msra.mxu0 0.0
  %1008 = vmatprep.subr.mxu0 0.0
  %1009 = vmatpush1.msra.mxu0 0.0
  %1010 = vmatprep.mubr.f32.mxu0 0.0
  %1011 = vmatmul.mubr.f32.gmra.mrb[0].mxu0 %v944
  %v1012 = vpop.f32.mrb[0].mxu0
  %v1013 = vadd.f32 %v942, %v1012
  %v1014 = vpop.f32.mrb[0].mxu0
  %1015 = vdwg.mxu0
  %1016 = vst.msk [vmem:[%s6] sm:$0xff] %vm759, %v1013
  // Predicated region
  $region26: #{wavelet_processor.1} parent=0 // pred_check
    _
  $region27: #{wavelet_processor.1} parent=0 // pred_check_branch
    %1018 = sbr.rel (0) target = $region29
  $region28: #{wavelet_processor.1} parent=0 // pred_region
    _
  $region29: #{wavelet_processor.1} parent=0 // pred_fallthru
    _
  // Predicated region
  $region30: #{wavelet_processor.1} parent=0 // pred_check
    _
  $region31: #{wavelet_processor.1} parent=0 // pred_check_branch
    %1020 = sbr.rel (0) target = $region33
  $region32: #{wavelet_processor.1} parent=0 // pred_region
    _
  $region33: #{wavelet_processor.1} parent=0 // pred_fallthru
    _

</llo_original>
